<compile_context>
chip_gen: v7x
topology: tpu7x:2x2x1
jax: 0.10.0
libtpu: 0.0.40
codegen_flags: <defaults>
</compile_context>

<pallas_src>
import functools
import math

import numpy as np
import jax
import jax.numpy as jnp
from jax.experimental import pallas as pl
from jax.experimental.pallas import tpu as pltpu

_EPS = 1e-5


# ---------------------------------------------------------------------------
# In-kernel helpers (pure value ops).
# ---------------------------------------------------------------------------
def _ky_windows(vpad, h):
    """(N, H+2, L) row-halo value -> (N, H, 3*L) ky-concat (taps h-1, h, h+1)."""
    return jnp.concatenate(
        [vpad[:, 0:h, :], vpad[:, 1:h + 1, :], vpad[:, 2:h + 2, :]], axis=2)


def _bn_relu(y, a_mat, gamma, beta, cnt):
    """Train-mode BatchNorm2d (biased batch stats over N,H,W) + ReLU, lane-dense.

    y: (M, W*C) f32; a_mat: (W*C, W*C) channel-replication matrix (f32);
    gamma/beta: (1, W*C) f32.  Sum and sum-of-squares are stacked into ONE
    (2, W*C) stat matmul (per-channel reduce + broadcast across W lane groups).
    """
    inv_cnt = 1.0 / cnt
    s = jnp.concatenate([jnp.sum(y, axis=0, keepdims=True),
                         jnp.sum(y * y, axis=0, keepdims=True)], axis=0)   # (2, L)
    stats = jnp.dot(s, a_mat, preferred_element_type=jnp.float32) * inv_cnt
    mu, ex2 = stats[0:1, :], stats[1:2, :]
    scale = jax.lax.rsqrt(ex2 - mu * mu + _EPS) * gamma
    shift = beta - mu * scale
    return jnp.maximum(y * scale + shift, 0.0)


def conv_block_kernel(xpad_ref, w1_ref, g1_ref, be1_ref, w2_ref, g2_ref, be2_ref,
                      a_ref, o_ref, *, N, H, W):
    cnt = float(N * H * W)
    a_mat = a_ref[...]                       # loaded once, shared by both BNs
    l2 = o_ref.shape[1]                      # W * Cout (lane-dense output width)
    cdtype = xpad_ref.dtype                  # matmul compute dtype (bf16 or f32)

    # ---- Conv1: ONE MXU matmul (ky folded via halo windows, kx via banded W).
    #      Conv bias omitted: cancels exactly against the train-mode BN mean.
    xcat1 = _ky_windows(xpad_ref[...], H).reshape(N * H, -1)
    y1 = jnp.dot(xcat1, w1_ref[...], preferred_element_type=jnp.float32)
    z1 = _bn_relu(y1, a_mat, g1_ref[...], be1_ref[...], cnt)          # f32

    # ---- Conv2: build the row halo once in-value, then ONE matmul.
    zrow = jnp.zeros((N, 1, l2), cdtype)
    z1pad = jnp.concatenate([zrow, z1.astype(cdtype).reshape(N, H, l2), zrow], axis=1)
    xcat2 = _ky_windows(z1pad, H).reshape(N * H, -1)
    y2 = jnp.dot(xcat2, w2_ref[...], preferred_element_type=jnp.float32)
    z2 = _bn_relu(y2, a_mat, g2_ref[...], be2_ref[...], cnt)

    o_ref[...] = z2.astype(o_ref.dtype)      # (N*H, W*Cout) lane-dense, unmasked store


# ---------------------------------------------------------------------------
# Wrapper (plain-XLA layout plumbing + weight expansion).
# ---------------------------------------------------------------------------
def _padded_channels(cin, width):
    """Smallest c >= cin with (width*c) % 128 == 0, when the cost is small."""
    unit = math.lcm(width, 128) // width
    cpad = -(-cin // unit) * unit
    return cpad if cpad <= max(8, 2 * cin) else cin


def _band_weights(wt_oihw, width, cin_pad):
    """PyTorch OIHW 3x3 conv weight -> (3*W*cin_pad, W*Cout) banded matrix.

    Both ky (row-block index) and kx (off-diagonal W-group band, zeroed at the
    width boundaries) are folded in, so a 'same' 3x3 conv over the lane-dense
    layout is a single matmul against the (N*H, 3*W*cin_pad) ky-concat.
    Row index = ky*(W*cin_pad) + w_in*cin_pad + ci, column = w_out*Cout + co.
    """
    cout, cin = wt_oihw.shape[0], wt_oihw.shape[1]
    core = jnp.transpose(wt_oihw.astype(jnp.float32), (2, 3, 1, 0))    # (ky,kx,ci,co)
    if cin_pad != cin:
        core = jnp.pad(core, ((0, 0), (0, 0), (0, cin_pad - cin), (0, 0)))
    w_in = jnp.arange(width)[:, None, None]
    kx = jnp.arange(3)[None, :, None]
    w_out = jnp.arange(width)[None, None, :]
    band = (w_in == w_out + kx - 1).astype(jnp.float32)                # (W, 3, W)
    full = jnp.einsum("uxw,yxio->yuiwo", band, core)   # (ky, w_in, ci, w_out, co)
    return full.reshape(3 * width * cin_pad, width * cout)


def conv_block_forward(x_nchw, params, *, compute_dtype=jnp.bfloat16):
    """x_nchw: (N, Cin, H, W) float32.  Returns (N, Cout, H, W) float32."""
    w1, b1, g1, be1, w2, b2, g2, be2 = params
    del b1, b2            # conv biases cancel exactly against the train-mode BN mean
    N, Cin, H, W = x_nchw.shape
    Cout = w1.shape[0]
    cin_p = _padded_channels(Cin, W)         # 4 -> 8 here: W*Cin = 128 (full vregs)
    l1, l2 = W * cin_p, W * Cout

    # Layout plumbing: NCHW -> lane-dense (N, H, W*cin_p), zero channel pad,
    # zero row halo (H -> H+2), cast to the MXU compute dtype.
    x_ld = jnp.transpose(x_nchw.astype(jnp.float32), (0, 2, 3, 1))     # (N,H,W,Cin)
    if cin_p != Cin:
        x_ld = jnp.pad(x_ld, ((0, 0), (0, 0), (0, 0), (0, cin_p - Cin)))
    x_pad = jnp.pad(x_ld.reshape(N, H, l1),
                    ((0, 0), (1, 1), (0, 0))).astype(compute_dtype)    # (N, H+2, l1)

    wb1 = _band_weights(w1, W, cin_p).astype(compute_dtype)            # (3*l1, l2)
    wb2 = _band_weights(w2, W, Cout).astype(compute_dtype)             # (3*l2, l2)

    # Static channel-replication matrix for the fused BN-stat matmul (f32).
    lane_ch = jnp.arange(l2) % Cout
    a_mat = (lane_ch[:, None] == lane_ch[None, :]).astype(jnp.float32)

    def lane_tile(v):                        # per-channel param -> (1, W*Cout) f32
        return jnp.tile(jnp.asarray(v, jnp.float32).reshape(1, Cout), (1, W))

    kernel = functools.partial(conv_block_kernel, N=N, H=H, W=W)
    vmem = pl.BlockSpec(memory_space=pltpu.MemorySpace.VMEM)
    out2d = pl.pallas_call(
        kernel,
        out_shape=jax.ShapeDtypeStruct((N * H, l2), jnp.float32),
        in_specs=[vmem] * 8,
        out_specs=vmem,
        compiler_params=pltpu.CompilerParams(vmem_limit_bytes=32 * 1024 * 1024),
    )(x_pad, wb1, lane_tile(g1), lane_tile(be1), wb2, lane_tile(g2), lane_tile(be2),
      a_mat)

    # Lane-dense (N*H, W*Cout) back to NCHW.
    return jnp.transpose(out2d.reshape(N, H, W, Cout), (0, 3, 1, 2))


def conv_block_ref(x, params):
    """Pure-JAX reference (NCHW), same semantics as the PyTorch module in train mode."""
    w1, b1, g1, be1, w2, b2, g2, be2 = params

    def block(x, w, b, g, be):
        y = jax.lax.conv_general_dilated(
            x, w, window_strides=(1, 1), padding=((1, 1), (1, 1)),
            dimension_numbers=("NCHW", "OIHW", "NCHW"))
        y = y + b.reshape(1, -1, 1, 1)
        mu = jnp.mean(y, axis=(0, 2, 3), keepdims=True)
        var = jnp.mean((y - mu) ** 2, axis=(0, 2, 3), keepdims=True)
        y = (y - mu) * jax.lax.rsqrt(var + _EPS) * g.reshape(1, -1, 1, 1) \
            + be.reshape(1, -1, 1, 1)
        return jnp.maximum(y, 0.0)

    return block(block(x, w1, b1, g1, be1), w2, b2, g2, be2)


if __name__ == "__main__":
    N, Cin, Cout, H, W = 2, 4, 8, 16, 16

    key = jax.random.PRNGKey(0)
    k = jax.random.split(key, 9)
    # Deterministic synthetic parameters (PyTorch shapes: conv weight OIHW).
    w1 = 0.1 * jax.random.normal(k[0], (Cout, Cin, 3, 3), jnp.float32)
    b1 = 0.1 * jax.random.normal(k[1], (Cout,), jnp.float32)
    g1 = 1.0 + 0.1 * jax.random.normal(k[2], (Cout,), jnp.float32)
    be1 = 0.1 * jax.random.normal(k[3], (Cout,), jnp.float32)
    w2 = 0.1 * jax.random.normal(k[4], (Cout, Cout, 3, 3), jnp.float32)
    b2 = 0.1 * jax.random.normal(k[5], (Cout,), jnp.float32)
    g2 = 1.0 + 0.1 * jax.random.normal(k[6], (Cout,), jnp.float32)
    be2 = 0.1 * jax.random.normal(k[7], (Cout,), jnp.float32)
    params = (w1, b1, g1, be1, w2, b2, g2, be2)

    x = jax.random.normal(k[8], (N, Cin, H, W), jnp.float32)

    # Production path: bf16 MXU operands, f32 BN math.
    out_bf16 = jax.block_until_ready(conv_block_forward(x, params))
    # f32 path for a tight structural-correctness check (same kernel, f32 operands).
    out_f32 = jax.block_until_ready(
        conv_block_forward(x, params, compute_dtype=jnp.float32))
    ref = jax.block_until_ready(conv_block_ref(x, params))

    np.testing.assert_allclose(np.asarray(out_f32), np.asarray(ref),
                               rtol=1e-3, atol=1e-3)
    # bf16 operands quantize the conv inputs/weights; looser tolerance by design.
    np.testing.assert_allclose(np.asarray(out_bf16), np.asarray(ref),
                               rtol=5e-2, atol=5e-2)
    print("KERNEL_OK")
</pallas_src>

<mosaic_0001>
module attributes {stable_mosaic.version = 11 : i64} {
  func.func @conv_block_kernel(%arg0: memref<2x18x128xbf16, #tpu.memory_space<vmem>>, %arg1: memref<384x128xbf16, #tpu.memory_space<vmem>>, %arg2: memref<1x128xf32, #tpu.memory_space<vmem>>, %arg3: memref<1x128xf32, #tpu.memory_space<vmem>>, %arg4: memref<384x128xbf16, #tpu.memory_space<vmem>>, %arg5: memref<1x128xf32, #tpu.memory_space<vmem>>, %arg6: memref<1x128xf32, #tpu.memory_space<vmem>>, %arg7: memref<128x128xf32, #tpu.memory_space<vmem>>, %arg8: memref<32x128xf32, #tpu.memory_space<vmem>>) attributes {dimension_semantics = [], scalar_prefetch = 0 : i64, scratch_operands = 0 : i64, tpu.core_type = #tpu.core_type<tc>} {
    %c0 = arith.constant 0 : index
    %c0_0 = arith.constant 0 : index
    %0 = vector.load %arg7[%c0, %c0_0] : memref<128x128xf32, #tpu.memory_space<vmem>>, vector<128x128xf32>
    %c0_1 = arith.constant 0 : index
    %c0_2 = arith.constant 0 : index
    %c0_3 = arith.constant 0 : index
    %1 = vector.load %arg0[%c0_1, %c0_2, %c0_3] : memref<2x18x128xbf16, #tpu.memory_space<vmem>>, vector<2x18x128xbf16>
    %2 = vector.extract_strided_slice %1 {offsets = [0, 0, 0], sizes = [2, 16, 128], strides = [1, 1, 1]} : vector<2x18x128xbf16> to vector<2x16x128xbf16>
    %3 = vector.extract_strided_slice %1 {offsets = [0, 1, 0], sizes = [2, 16, 128], strides = [1, 1, 1]} : vector<2x18x128xbf16> to vector<2x16x128xbf16>
    %4 = vector.extract_strided_slice %1 {offsets = [0, 2, 0], sizes = [2, 16, 128], strides = [1, 1, 1]} : vector<2x18x128xbf16> to vector<2x16x128xbf16>
    %5 = tpu.concatenate %2, %3, %4 in 2 : vector<2x16x128xbf16>, vector<2x16x128xbf16>, vector<2x16x128xbf16> -> vector<2x16x384xbf16>
    %6 = vector.shape_cast %5 : vector<2x16x384xbf16> to vector<32x384xbf16>
    %c0_4 = arith.constant 0 : index
    %c0_5 = arith.constant 0 : index
    %7 = vector.load %arg1[%c0_4, %c0_5] : memref<384x128xbf16, #tpu.memory_space<vmem>>, vector<384x128xbf16>
    %cst = arith.constant dense<0.000000e+00> : vector<32x128xf32>
    %8 = tpu.matmul %6, %7, %cst {dimension_numbers = #tpu.dot_dimension_numbers<[1], [0], [0], [1], [0, 0, 1, 1], [], []>} : vector<32x384xbf16>, vector<384x128xbf16>, vector<32x128xf32> -> vector<32x128xf32>
    %c0_6 = arith.constant 0 : index
    %c0_7 = arith.constant 0 : index
    %9 = vector.load %arg2[%c0_6, %c0_7] : memref<1x128xf32, #tpu.memory_space<vmem>>, vector<1x128xf32>
    %c0_8 = arith.constant 0 : index
    %c0_9 = arith.constant 0 : index
    %10 = vector.load %arg3[%c0_8, %c0_9] : memref<1x128xf32, #tpu.memory_space<vmem>>, vector<1x128xf32>
    %cst_10 = arith.constant dense<0.000000e+00> : vector<128xf32>
    %11 = vector.multi_reduction <add>, %8, %cst_10 [0] : vector<32x128xf32> to vector<128xf32>
    %12 = vector.shape_cast %11 : vector<128xf32> to vector<1x128xf32>
    %13 = arith.mulf %8, %8 : vector<32x128xf32>
    %cst_11 = arith.constant dense<0.000000e+00> : vector<128xf32>
    %14 = vector.multi_reduction <add>, %13, %cst_11 [0] : vector<32x128xf32> to vector<128xf32>
    %15 = vector.shape_cast %14 : vector<128xf32> to vector<1x128xf32>
    %16 = tpu.concatenate %12, %15 in 0 : vector<1x128xf32>, vector<1x128xf32> -> vector<2x128xf32>
    %cst_12 = arith.constant dense<0.000000e+00> : vector<2x128xf32>
    %17 = tpu.matmul %16, %0, %cst_12 {dimension_numbers = #tpu.dot_dimension_numbers<[1], [0], [0], [1], [0, 0, 1, 1], [], []>} : vector<2x128xf32>, vector<128x128xf32>, vector<2x128xf32> -> vector<2x128xf32>
    %cst_13 = arith.constant 0.001953125 : f32
    %18 = vector.broadcast %cst_13 : f32 to vector<2x128xf32>
    %19 = arith.mulf %17, %18 : vector<2x128xf32>
    %20 = vector.extract_strided_slice %19 {offsets = [0, 0], sizes = [1, 128], strides = [1, 1]} : vector<2x128xf32> to vector<1x128xf32>
    %21 = vector.extract_strided_slice %19 {offsets = [1, 0], sizes = [1, 128], strides = [1, 1]} : vector<2x128xf32> to vector<1x128xf32>
    %22 = arith.mulf %20, %20 : vector<1x128xf32>
    %23 = arith.subf %21, %22 : vector<1x128xf32>
    %cst_14 = arith.constant 9.99999974E-6 : f32
    %24 = vector.broadcast %cst_14 : f32 to vector<1x128xf32>
    %25 = arith.addf %23, %24 : vector<1x128xf32>
    %26 = math.rsqrt %25 : vector<1x128xf32>
    %27 = arith.mulf %26, %9 : vector<1x128xf32>
    %28 = arith.mulf %20, %27 : vector<1x128xf32>
    %29 = arith.subf %10, %28 : vector<1x128xf32>
    %30 = vector.broadcast %27 : vector<1x128xf32> to vector<32x128xf32>
    %31 = arith.mulf %8, %30 : vector<32x128xf32>
    %32 = vector.broadcast %29 : vector<1x128xf32> to vector<32x128xf32>
    %33 = arith.addf %31, %32 : vector<32x128xf32>
    %cst_15 = arith.constant 0.000000e+00 : f32
    %34 = vector.broadcast %cst_15 : f32 to vector<32x128xf32>
    %35 = arith.maximumf %33, %34 : vector<32x128xf32>
    %cst_16 = arith.constant 0.000000e+00 : bf16
    %36 = vector.broadcast %cst_16 : bf16 to vector<2x1x128xbf16>
    %37 = arith.truncf %35 : vector<32x128xf32> to vector<32x128xbf16>
    %38 = vector.shape_cast %37 : vector<32x128xbf16> to vector<2x16x128xbf16>
    %39 = tpu.concatenate %36, %38, %36 in 1 : vector<2x1x128xbf16>, vector<2x16x128xbf16>, vector<2x1x128xbf16> -> vector<2x18x128xbf16>
    %40 = vector.extract_strided_slice %39 {offsets = [0, 0, 0], sizes = [2, 16, 128], strides = [1, 1, 1]} : vector<2x18x128xbf16> to vector<2x16x128xbf16>
    %41 = vector.extract_strided_slice %39 {offsets = [0, 1, 0], sizes = [2, 16, 128], strides = [1, 1, 1]} : vector<2x18x128xbf16> to vector<2x16x128xbf16>
    %42 = vector.extract_strided_slice %39 {offsets = [0, 2, 0], sizes = [2, 16, 128], strides = [1, 1, 1]} : vector<2x18x128xbf16> to vector<2x16x128xbf16>
    %43 = tpu.concatenate %40, %41, %42 in 2 : vector<2x16x128xbf16>, vector<2x16x128xbf16>, vector<2x16x128xbf16> -> vector<2x16x384xbf16>
    %44 = vector.shape_cast %43 : vector<2x16x384xbf16> to vector<32x384xbf16>
    %c0_17 = arith.constant 0 : index
    %c0_18 = arith.constant 0 : index
    %45 = vector.load %arg4[%c0_17, %c0_18] : memref<384x128xbf16, #tpu.memory_space<vmem>>, vector<384x128xbf16>
    %cst_19 = arith.constant dense<0.000000e+00> : vector<32x128xf32>
    %46 = tpu.matmul %44, %45, %cst_19 {dimension_numbers = #tpu.dot_dimension_numbers<[1], [0], [0], [1], [0, 0, 1, 1], [], []>} : vector<32x384xbf16>, vector<384x128xbf16>, vector<32x128xf32> -> vector<32x128xf32>
    %c0_20 = arith.constant 0 : index
    %c0_21 = arith.constant 0 : index
    %47 = vector.load %arg5[%c0_20, %c0_21] : memref<1x128xf32, #tpu.memory_space<vmem>>, vector<1x128xf32>
    %c0_22 = arith.constant 0 : index
    %c0_23 = arith.constant 0 : index
    %48 = vector.load %arg6[%c0_22, %c0_23] : memref<1x128xf32, #tpu.memory_space<vmem>>, vector<1x128xf32>
    %cst_24 = arith.constant dense<0.000000e+00> : vector<128xf32>
    %49 = vector.multi_reduction <add>, %46, %cst_24 [0] : vector<32x128xf32> to vector<128xf32>
    %50 = vector.shape_cast %49 : vector<128xf32> to vector<1x128xf32>
    %51 = arith.mulf %46, %46 : vector<32x128xf32>
    %cst_25 = arith.constant dense<0.000000e+00> : vector<128xf32>
    %52 = vector.multi_reduction <add>, %51, %cst_25 [0] : vector<32x128xf32> to vector<128xf32>
    %53 = vector.shape_cast %52 : vector<128xf32> to vector<1x128xf32>
    %54 = tpu.concatenate %50, %53 in 0 : vector<1x128xf32>, vector<1x128xf32> -> vector<2x128xf32>
    %cst_26 = arith.constant dense<0.000000e+00> : vector<2x128xf32>
    %55 = tpu.matmul %54, %0, %cst_26 {dimension_numbers = #tpu.dot_dimension_numbers<[1], [0], [0], [1], [0, 0, 1, 1], [], []>} : vector<2x128xf32>, vector<128x128xf32>, vector<2x128xf32> -> vector<2x128xf32>
    %cst_27 = arith.constant 0.001953125 : f32
    %56 = vector.broadcast %cst_27 : f32 to vector<2x128xf32>
    %57 = arith.mulf %55, %56 : vector<2x128xf32>
    %58 = vector.extract_strided_slice %57 {offsets = [0, 0], sizes = [1, 128], strides = [1, 1]} : vector<2x128xf32> to vector<1x128xf32>
    %59 = vector.extract_strided_slice %57 {offsets = [1, 0], sizes = [1, 128], strides = [1, 1]} : vector<2x128xf32> to vector<1x128xf32>
    %60 = arith.mulf %58, %58 : vector<1x128xf32>
    %61 = arith.subf %59, %60 : vector<1x128xf32>
    %cst_28 = arith.constant 9.99999974E-6 : f32
    %62 = vector.broadcast %cst_28 : f32 to vector<1x128xf32>
    %63 = arith.addf %61, %62 : vector<1x128xf32>
    %64 = math.rsqrt %63 : vector<1x128xf32>
    %65 = arith.mulf %64, %47 : vector<1x128xf32>
    %66 = arith.mulf %58, %65 : vector<1x128xf32>
    %67 = arith.subf %48, %66 : vector<1x128xf32>
    %68 = vector.broadcast %65 : vector<1x128xf32> to vector<32x128xf32>
    %69 = arith.mulf %46, %68 : vector<32x128xf32>
    %70 = vector.broadcast %67 : vector<1x128xf32> to vector<32x128xf32>
    %71 = arith.addf %69, %70 : vector<32x128xf32>
    %cst_29 = arith.constant 0.000000e+00 : f32
    %72 = vector.broadcast %cst_29 : f32 to vector<32x128xf32>
    %73 = arith.maximumf %71, %72 : vector<32x128xf32>
    %c0_30 = arith.constant 0 : index
    %c0_31 = arith.constant 0 : index
    %74 = vector.load %arg8[%c0_30, %c0_31] : memref<32x128xf32, #tpu.memory_space<vmem>>, vector<32x128xf32>
    tpu.vector_store %arg8[%c0_30, %c0_31], %73 {strides = array<i32>} : memref<32x128xf32, #tpu.memory_space<vmem>>, vector<32x128xf32>,
    return
  }
}

</mosaic_0001>

<llo_original>
// kernel: tpu_custom_call.1
$region0: #{tpu_custom_call.1}
  #allocation0 [shape = 'u32[]', space=smem, size = 0x4, offset = 0x4, fixed_abs, tag = 'smem constant byte address 0x4 - core index']
  #allocation1 [shape = 'u32[144,128]{1,0:T(1,128)}', space=vmem, size = 0x12000, scoped, tag = 'internal scratch']
  %s0 = inlined_call_operand.vmem [shape: bf16[2,18,128], index: 0, kind: input, shape index: {}]
  %s1 = inlined_call_operand.hbm [shape: bf16[384,128], index: 1, kind: input, shape index: {}]
  %s2 = inlined_call_operand.vmem [shape: f32[1,128], index: 2, kind: input, shape index: {}]
  %s3 = inlined_call_operand.vmem [shape: f32[1,128], index: 3, kind: input, shape index: {}]
  %s4 = inlined_call_operand.hbm [shape: bf16[384,128], index: 4, kind: input, shape index: {}]
  %s5 = inlined_call_operand.vmem [shape: f32[1,128], index: 5, kind: input, shape index: {}]
  %s6 = inlined_call_operand.vmem [shape: f32[1,128], index: 6, kind: input, shape index: {}]
  %s7 = inlined_call_operand.hbm [shape: f32[128,128], index: 7, kind: input, shape index: {}]
  %s8 = inlined_call_operand.hbm [shape: f32[32,128], index: 8, kind: output, shape index: {}]
  %s9 = sld [smem:[#allocation0]]
  $region54: #{tpu_custom_call.1} parent=0
    _
  %s11 = ssub.s32 1, %s9
  %s12 = scalar_select 0, %s11, %s9
  $region1: #{tpu_custom_call.1} parent=0
    #allocation2 [shape = 'u8[98304]{0}', space=vmem, size = 0x18000, scoped, tag = 'input window, operand 1, single buffered']
    #allocation3 [shape = 's32[1]{0}', space=sflag, size = 0x4, scoped, tag = 'scoped memory for tpu_custom_call.1']
    #allocation4 [shape = 's32[1]{0}', space=sflag, size = 0x4, scoped, tag = 'scoped memory for tpu_custom_call.1']
    #allocation5 [shape = 'u8[98304]{0}', space=vmem, size = 0x18000, scoped, tag = 'input window, operand 4, single buffered']
    #allocation6 [shape = 's32[1]{0}', space=sflag, size = 0x4, scoped, tag = 'scoped memory for tpu_custom_call.1']
    #allocation7 [shape = 'u8[65536]{0}', space=vmem, size = 0x10000, scoped, tag = 'input window, operand 7, single buffered']
    #allocation8 [shape = 'u8[16384]{0}', space=vmem, size = 0x4000, scoped, tag = 'output window, operand 0, single buffered']
    %13 = vsyncpa [#allocation3], 0
    %14 = vsyncpa [#allocation6], 0
    %15 = vsyncpa [#allocation4], 0
    // Predicated region
    $region2: #{tpu_custom_call.1} parent=1 // pred_check
      _
    $region3: #{tpu_custom_call.1} parent=1 // pred_check_branch
      %17 = sbr.rel (0) target = $region5
    $region4: #{tpu_custom_call.1} parent=1 // pred_region
      _
    $region5: #{tpu_custom_call.1} parent=1 // pred_fallthru
      _
    // Predicated region
    $region6: #{tpu_custom_call.1} parent=1 // pred_check
      _
    $region7: #{tpu_custom_call.1} parent=1 // pred_check_branch
      %19 = sbr.rel (0) target = $region9
    $region8: #{tpu_custom_call.1} parent=1 // pred_region
      %s21 = ssub.s32 3072, 3072
      %22 = vsyncadd [#allocation3], %s21
      %s23 = sshll.u32 [#allocation2], 4
      %s24 = int_to_ptr.vmem [resolvable:$true] %s23
      %29 = dma.hbm_to_vmem [thread:$0]  %s1, 3072, %s24, [#allocation3], 64, 64, 4
    $region9: #{tpu_custom_call.1} parent=1 // pred_fallthru
      _
    // Predicated region
    $region10: #{tpu_custom_call.1} parent=1 // pred_check
      _
    $region11: #{tpu_custom_call.1} parent=1 // pred_check_branch
      %31 = sbr.rel (0) target = $region13
    $region12: #{tpu_custom_call.1} parent=1 // pred_region
      _
    $region13: #{tpu_custom_call.1} parent=1 // pred_fallthru
      _
    // Predicated region
    $region14: #{tpu_custom_call.1} parent=1 // pred_check
      _
    $region15: #{tpu_custom_call.1} parent=1 // pred_check_branch
      %33 = sbr.rel (0) target = $region17
    $region16: #{tpu_custom_call.1} parent=1 // pred_region
      _
    $region17: #{tpu_custom_call.1} parent=1 // pred_fallthru
      _
    // Predicated region
    $region18: #{tpu_custom_call.1} parent=1 // pred_check
      _
    $region19: #{tpu_custom_call.1} parent=1 // pred_check_branch
      %35 = sbr.rel (0) target = $region21
    $region20: #{tpu_custom_call.1} parent=1 // pred_region
      %s37 = ssub.s32 3072, 3072
      %38 = vsyncadd [#allocation6], %s37
      %s39 = sshll.u32 [#allocation5], 4
      %s40 = int_to_ptr.vmem [resolvable:$true] %s39
      %45 = dma.hbm_to_vmem [thread:$0]  %s4, 3072, %s40, [#allocation6], 64, 64, 4
    $region21: #{tpu_custom_call.1} parent=1 // pred_fallthru
      _
    // Predicated region
    $region22: #{tpu_custom_call.1} parent=1 // pred_check
      _
    $region23: #{tpu_custom_call.1} parent=1 // pred_check_branch
      %47 = sbr.rel (0) target = $region25
    $region24: #{tpu_custom_call.1} parent=1 // pred_region
      _
    $region25: #{tpu_custom_call.1} parent=1 // pred_fallthru
      _
    // Predicated region
    $region26: #{tpu_custom_call.1} parent=1 // pred_check
      _
    $region27: #{tpu_custom_call.1} parent=1 // pred_check_branch
      %49 = sbr.rel (0) target = $region29
    $region28: #{tpu_custom_call.1} parent=1 // pred_region
      _
    $region29: #{tpu_custom_call.1} parent=1 // pred_fallthru
      _
    // Predicated region
    $region30: #{tpu_custom_call.1} parent=1 // pred_check
      _
    $region31: #{tpu_custom_call.1} parent=1 // pred_check_branch
      %51 = sbr.rel (0) target = $region33
    $region32: #{tpu_custom_call.1} parent=1 // pred_region
      %s53 = ssub.s32 2048, 2048
      %54 = vsyncadd [#allocation6], %s53
      %s55 = sshll.u32 [#allocation7], 4
      %s56 = int_to_ptr.vmem [resolvable:$true] %s55
      %61 = dma.hbm_to_vmem [thread:$0]  %s7, 2048, %s56, [#allocation6], 128, 128, 8
    $region33: #{tpu_custom_call.1} parent=1 // pred_fallthru
      _
    // Predicated region
    $region34: #{tpu_custom_call.1} parent=1 // pred_check
      _
    $region35: #{tpu_custom_call.1} parent=1 // pred_check_branch
      %63 = sbr.rel (0) target = $region37
    $region36: #{tpu_custom_call.1} parent=1 // pred_region
      %64 = dma.done [#allocation3], 3072
    $region37: #{tpu_custom_call.1} parent=1 // pred_fallthru
      _
    // Predicated region
    $region38: #{tpu_custom_call.1} parent=1 // pred_check
      _
    $region39: #{tpu_custom_call.1} parent=1 // pred_check_branch
      %66 = sbr.rel (0) target = $region41
    $region40: #{tpu_custom_call.1} parent=1 // pred_region
      %67 = dma.done [#allocation6], 3072
    $region41: #{tpu_custom_call.1} parent=1 // pred_fallthru
      _
    // Predicated region
    $region42: #{tpu_custom_call.1} parent=1 // pred_check
      _
    $region43: #{tpu_custom_call.1} parent=1 // pred_check_branch
      %69 = sbr.rel (0) target = $region45
    $region44: #{tpu_custom_call.1} parent=1 // pred_region
      %70 = dma.done [#allocation6], 2048
    $region45: #{tpu_custom_call.1} parent=1 // pred_fallthru
      _
    %v72 = vld [vmem:[#allocation7] sm:$0xff]
    %v73 = vld [vmem:[#allocation7 + $0x8] sm:$0xff]
    %v74 = vld [vmem:[#allocation7 + $0x10] sm:$0xff]
    %v75 = vld [vmem:[#allocation7 + $0x18] sm:$0xff]
    %v76 = vld [vmem:[#allocation7 + $0x20] sm:$0xff]
    %v77 = vld [vmem:[#allocation7 + $0x28] sm:$0xff]
    %v78 = vld [vmem:[#allocation7 + $0x30] sm:$0xff]
    %v79 = vld [vmem:[#allocation7 + $0x38] sm:$0xff]
    %v80 = vld [vmem:[#allocation7 + $0x40] sm:$0xff]
    %v81 = vld [vmem:[#allocation7 + $0x48] sm:$0xff]
    %v82 = vld [vmem:[#allocation7 + $0x50] sm:$0xff]
    %v83 = vld [vmem:[#allocation7 + $0x58] sm:$0xff]
    %v84 = vld [vmem:[#allocation7 + $0x60] sm:$0xff]
    %v85 = vld [vmem:[#allocation7 + $0x68] sm:$0xff]
    %v86 = vld [vmem:[#allocation7 + $0x70] sm:$0xff]
    %v87 = vld [vmem:[#allocation7 + $0x78] sm:$0xff]
    %v88 = vld [vmem:[%s0] sm:$0xf]
    %v89 = vld [vmem:[%s0 + $0x4] sm:$0xf]
    %v90 = vld [vmem:[%s0 + $0x8] sm:$0x1]
    %v91 = vld [vmem:[%s0 + $0xc] sm:$0xf]
    %v92 = vld [vmem:[%s0 + $0x10] sm:$0xf]
    %v93 = vld [vmem:[%s0 + $0x14] sm:$0x1]
    %v98 = vunpack.c.l.b16 %v88
    %v99 = vunpack.c.l.b16 %v89
    %v100 = vunpack.c.l.b16 %v91
    %v101 = vunpack.c.l.b16 %v92
    %v102 = vpack.c.b16 %v99, %v98
    %v103 = vpack.c.b16 %v101, %v100
    %v108 = vunpack.c.l.b16 %v90
    %v109 = vunpack.c.l.b16 %v93
    %v110 = vpack.c.b16 %v108, %v108
    %v111 = vpack.c.b16 %v109, %v109
    %vm112 = vsmask.f32 7424
    %v114 = vshrl.u32 %v102, 16
    %v116 = vshll.u32 %v102, 16
    %v118 = vrot.slane %v116, 1
    %v119 = vor.u32 %v114, %v118
    %v121 = vshll.u32 %v110, 16
    %v123 = vrot.slane %v121, 1
    %v124 = vsel %vm112, %v119, %v123
    %v126 = vshrl.u32 %v103, 16
    %v128 = vshll.u32 %v103, 16
    %v130 = vrot.slane %v128, 1
    %v131 = vor.u32 %v126, %v130
    %v133 = vshll.u32 %v111, 16
    %v135 = vrot.slane %v133, 1
    %v136 = vsel %vm112, %v131, %v135
    %vm139 = vcmask 1046528
    %v140 = vrot.slane %v102, 1
    %v141 = vrot.slane %v110, 1
    %v142 = vsel %vm139, %v140, %v141
    %v143 = vrot.slane %v103, 1
    %v144 = vrot.slane %v111, 1
    %v145 = vsel %vm139, %v143, %v144
    %v148 = vld [vmem:[#allocation2] sm:$0xf]
    %v149 = vld [vmem:[#allocation2 + $0x4] sm:$0xf]
    %v150 = vld [vmem:[#allocation2 + $0x8] sm:$0xf]
    %v151 = vld [vmem:[#allocation2 + $0xc] sm:$0xf]
    %v152 = vld [vmem:[#allocation2 + $0x10] sm:$0xf]
    %v153 = vld [vmem:[#allocation2 + $0x14] sm:$0xf]
    %v154 = vld [vmem:[#allocation2 + $0x18] sm:$0xf]
    %v155 = vld [vmem:[#allocation2 + $0x1c] sm:$0xf]
    %v156 = vld [vmem:[#allocation2 + $0x20] sm:$0xf]
    %v157 = vld [vmem:[#allocation2 + $0x24] sm:$0xf]
    %v158 = vld [vmem:[#allocation2 + $0x28] sm:$0xf]
    %v159 = vld [vmem:[#allocation2 + $0x2c] sm:$0xf]
    %v160 = vld [vmem:[#allocation2 + $0x30] sm:$0xf]
    %v161 = vld [vmem:[#allocation2 + $0x34] sm:$0xf]
    %v162 = vld [vmem:[#allocation2 + $0x38] sm:$0xf]
    %v163 = vld [vmem:[#allocation2 + $0x3c] sm:$0xf]
    %v164 = vld [vmem:[#allocation2 + $0x40] sm:$0xf]
    %v165 = vld [vmem:[#allocation2 + $0x44] sm:$0xf]
    %v166 = vld [vmem:[#allocation2 + $0x48] sm:$0xf]
    %v167 = vld [vmem:[#allocation2 + $0x4c] sm:$0xf]
    %v168 = vld [vmem:[#allocation2 + $0x50] sm:$0xf]
    %v169 = vld [vmem:[#allocation2 + $0x54] sm:$0xf]
    %v170 = vld [vmem:[#allocation2 + $0x58] sm:$0xf]
    %v171 = vld [vmem:[#allocation2 + $0x5c] sm:$0xf]
    %v172 = vld [vmem:[#allocation2 + $0x60] sm:$0xf]
    %v173 = vld [vmem:[#allocation2 + $0x64] sm:$0xf]
    %v174 = vld [vmem:[#allocation2 + $0x68] sm:$0xf]
    %v175 = vld [vmem:[#allocation2 + $0x6c] sm:$0xf]
    %v176 = vld [vmem:[#allocation2 + $0x70] sm:$0xf]
    %v177 = vld [vmem:[#allocation2 + $0x74] sm:$0xf]
    %v178 = vld [vmem:[#allocation2 + $0x78] sm:$0xf]
    %v179 = vld [vmem:[#allocation2 + $0x7c] sm:$0xf]
    %v180 = vld [vmem:[#allocation2 + $0x80] sm:$0xf]
    %v181 = vld [vmem:[#allocation2 + $0x84] sm:$0xf]
    %v182 = vld [vmem:[#allocation2 + $0x88] sm:$0xf]
    %v183 = vld [vmem:[#allocation2 + $0x8c] sm:$0xf]
    %v184 = vld [vmem:[#allocation2 + $0x90] sm:$0xf]
    %v185 = vld [vmem:[#allocation2 + $0x94] sm:$0xf]
    %v186 = vld [vmem:[#allocation2 + $0x98] sm:$0xf]
    %v187 = vld [vmem:[#allocation2 + $0x9c] sm:$0xf]
    %v188 = vld [vmem:[#allocation2 + $0xa0] sm:$0xf]
    %v189 = vld [vmem:[#allocation2 + $0xa4] sm:$0xf]
    %v190 = vld [vmem:[#allocation2 + $0xa8] sm:$0xf]
    %v191 = vld [vmem:[#allocation2 + $0xac] sm:$0xf]
    %v192 = vld [vmem:[#allocation2 + $0xb0] sm:$0xf]
    %v193 = vld [vmem:[#allocation2 + $0xb4] sm:$0xf]
    %v194 = vld [vmem:[#allocation2 + $0xb8] sm:$0xf]
    %v195 = vld [vmem:[#allocation2 + $0xbc] sm:$0xf]
    %v244 = vunpack.c.l.b16 %v148
    %v245 = vunpack.c.l.b16 %v149
    %v246 = vunpack.c.l.b16 %v150
    %v247 = vunpack.c.l.b16 %v151
    %v248 = vunpack.c.l.b16 %v152
    %v249 = vunpack.c.l.b16 %v153
    %v250 = vunpack.c.l.b16 %v154
    %v251 = vunpack.c.l.b16 %v155
    %v252 = vunpack.c.l.b16 %v156
    %v253 = vunpack.c.l.b16 %v157
    %v254 = vunpack.c.l.b16 %v158
    %v255 = vunpack.c.l.b16 %v159
    %v256 = vunpack.c.l.b16 %v160
    %v257 = vunpack.c.l.b16 %v161
    %v258 = vunpack.c.l.b16 %v162
    %v259 = vunpack.c.l.b16 %v163
    %v260 = vunpack.c.l.b16 %v164
    %v261 = vunpack.c.l.b16 %v165
    %v262 = vunpack.c.l.b16 %v166
    %v263 = vunpack.c.l.b16 %v167
    %v264 = vunpack.c.l.b16 %v168
    %v265 = vunpack.c.l.b16 %v169
    %v266 = vunpack.c.l.b16 %v170
    %v267 = vunpack.c.l.b16 %v171
    %v268 = vunpack.c.l.b16 %v172
    %v269 = vunpack.c.l.b16 %v173
    %v270 = vunpack.c.l.b16 %v174
    %v271 = vunpack.c.l.b16 %v175
    %v272 = vunpack.c.l.b16 %v176
    %v273 = vunpack.c.l.b16 %v177
    %v274 = vunpack.c.l.b16 %v178
    %v275 = vunpack.c.l.b16 %v179
    %v276 = vunpack.c.l.b16 %v180
    %v277 = vunpack.c.l.b16 %v181
    %v278 = vunpack.c.l.b16 %v182
    %v279 = vunpack.c.l.b16 %v183
    %v280 = vunpack.c.l.b16 %v184
    %v281 = vunpack.c.l.b16 %v185
    %v282 = vunpack.c.l.b16 %v186
    %v283 = vunpack.c.l.b16 %v187
    %v284 = vunpack.c.l.b16 %v188
    %v285 = vunpack.c.l.b16 %v189
    %v286 = vunpack.c.l.b16 %v190
    %v287 = vunpack.c.l.b16 %v191
    %v288 = vunpack.c.l.b16 %v192
    %v289 = vunpack.c.l.b16 %v193
    %v290 = vunpack.c.l.b16 %v194
    %v291 = vunpack.c.l.b16 %v195
    %v292 = vpack.c.b16 %v245, %v244
    %v293 = vpack.c.b16 %v247, %v246
    %v294 = vpack.c.b16 %v249, %v248
    %v295 = vpack.c.b16 %v251, %v250
    %v296 = vpack.c.b16 %v253, %v252
    %v297 = vpack.c.b16 %v255, %v254
    %v298 = vpack.c.b16 %v257, %v256
    %v299 = vpack.c.b16 %v259, %v258
    %v300 = vpack.c.b16 %v261, %v260
    %v301 = vpack.c.b16 %v263, %v262
    %v302 = vpack.c.b16 %v265, %v264
    %v303 = vpack.c.b16 %v267, %v266
    %v304 = vpack.c.b16 %v269, %v268
    %v305 = vpack.c.b16 %v271, %v270
    %v306 = vpack.c.b16 %v273, %v272
    %v307 = vpack.c.b16 %v275, %v274
    %v308 = vpack.c.b16 %v277, %v276
    %v309 = vpack.c.b16 %v279, %v278
    %v310 = vpack.c.b16 %v281, %v280
    %v311 = vpack.c.b16 %v283, %v282
    %v312 = vpack.c.b16 %v285, %v284
    %v313 = vpack.c.b16 %v287, %v286
    %v314 = vpack.c.b16 %v289, %v288
    %v315 = vpack.c.b16 %v291, %v290
    %340 = vmatprep.subr.bf16.mxu0 0
    %341 = vmatpush1.bf16.msra.mxu0 %v292
    %342 = vmatprep.subr.bf16.mxu0 0
    %343 = vmatpush1.bf16.msra.mxu0 %v293
    %344 = vmatprep.subr.bf16.mxu0 0
    %345 = vmatpush1.bf16.msra.mxu0 %v294
    %346 = vmatprep.subr.bf16.mxu0 0
    %347 = vmatpush1.bf16.msra.mxu0 %v295
    %348 = vmatprep.subr.bf16.mxu0 0
    %349 = vmatpush1.bf16.msra.mxu0 %v296
    %350 = vmatprep.subr.bf16.mxu0 0
    %351 = vmatpush1.bf16.msra.mxu0 %v297
    %352 = vmatprep.subr.bf16.mxu0 0
    %353 = vmatpush1.bf16.msra.mxu0 %v298
    %354 = vmatprep.subr.bf16.mxu0 0
    %355 = vmatpush1.bf16.msra.mxu0 %v299
    %356 = vmatprep.subr.bf16.mxu0 0
    %357 = vmatpush1.bf16.msra.mxu0 %v300
    %358 = vmatprep.subr.bf16.mxu0 0
    %359 = vmatpush1.bf16.msra.mxu0 %v301
    %360 = vmatprep.subr.bf16.mxu0 0
    %361 = vmatpush1.bf16.msra.mxu0 %v302
    %362 = vmatprep.subr.bf16.mxu0 0
    %363 = vmatpush1.bf16.msra.mxu0 %v303
    %364 = vmatprep.subr.bf16.mxu0 0
    %365 = vmatpush1.bf16.msra.mxu0 %v304
    %366 = vmatprep.subr.bf16.mxu0 0
    %367 = vmatpush1.bf16.msra.mxu0 %v305
    %368 = vmatprep.subr.bf16.mxu0 0
    %369 = vmatpush1.bf16.msra.mxu0 %v306
    %370 = vmatprep.subr.bf16.mxu0 0
    %371 = vmatpush1.bf16.msra.mxu0 %v307
    %372 = vmatprep.mubr.bf16.mxu0 %v124
    %373 = vmatmul.mubr.bf16.gmra.mrb[0].mxu0 %v102
    %v374 = vpop.f32.mrb[0].mxu0
    %v375 = vadd.f32 0.0, %v374
    %v376 = vpop.f32.mrb[0].mxu0
    %v377 = vpop.f32.mrb[0].mxu0
    %v378 = vadd.f32 0.0, %v377
    %v379 = vpop.f32.mrb[0].mxu0
    %380 = vmatprep.mubr.bf16.mxu0 %v136
    %381 = vmatmul.mubr.bf16.gmra.mrb[0].mxu0 %v103
    %v382 = vpop.f32.mrb[0].mxu0
    %v383 = vadd.f32 0.0, %v382
    %v384 = vpop.f32.mrb[0].mxu0
    %v385 = vpop.f32.mrb[0].mxu0
    %v386 = vadd.f32 0.0, %v385
    %v387 = vpop.f32.mrb[0].mxu0
    %388 = vdwg.mxu0
    %389 = vmatprep.subr.bf16.mxu0 0
    %390 = vmatpush1.bf16.msra.mxu0 %v308
    %391 = vmatprep.subr.bf16.mxu0 0
    %392 = vmatpush1.bf16.msra.mxu0 %v309
    %393 = vmatprep.subr.bf16.mxu0 0
    %394 = vmatpush1.bf16.msra.mxu0 %v310
    %395 = vmatprep.subr.bf16.mxu0 0
    %396 = vmatpush1.bf16.msra.mxu0 %v311
    %397 = vmatprep.subr.bf16.mxu0 0
    %398 = vmatpush1.bf16.msra.mxu0 %v312
    %399 = vmatprep.subr.bf16.mxu0 0
    %400 = vmatpush1.bf16.msra.mxu0 %v313
    %401 = vmatprep.subr.bf16.mxu0 0
    %402 = vmatpush1.bf16.msra.mxu0 %v314
    %403 = vmatprep.subr.bf16.mxu0 0
    %404 = vmatpush1.bf16.msra.mxu0 %v315
    %405 = vmatprep.subr.bf16.mxu0 0
    %406 = vmatpush1.bf16.msra.mxu0 0
    %407 = vmatprep.subr.bf16.mxu0 0
    %408 = vmatpush1.bf16.msra.mxu0 0
    %409 = vmatprep.subr.bf16.mxu0 0
    %410 = vmatpush1.bf16.msra.mxu0 0
    %411 = vmatprep.subr.bf16.mxu0 0
    %412 = vmatpush1.bf16.msra.mxu0 0
    %413 = vmatprep.subr.bf16.mxu0 0
    %414 = vmatpush1.bf16.msra.mxu0 0
    %415 = vmatprep.subr.bf16.mxu0 0
    %416 = vmatpush1.bf16.msra.mxu0 0
    %417 = vmatprep.subr.bf16.mxu0 0
    %418 = vmatpush1.bf16.msra.mxu0 0
    %419 = vmatprep.subr.bf16.mxu0 0
    %420 = vmatpush1.bf16.msra.mxu0 0
    %421 = vmatprep.mubr.bf16.mxu0 0
    %422 = vmatmul.mubr.bf16.gmra.mrb[0].mxu0 %v142
    %v423 = vpop.f32.mrb[0].mxu0
    %v424 = vadd.f32 %v375, %v423
    %v425 = vpop.f32.mrb[0].mxu0
    %v426 = vpop.f32.mrb[0].mxu0
    %v427 = vadd.f32 %v378, %v426
    %v428 = vpop.f32.mrb[0].mxu0
    %429 = vmatprep.mubr.bf16.mxu0 0
    %430 = vmatmul.mubr.bf16.gmra.mrb[0].mxu0 %v145
    %v431 = vpop.f32.mrb[0].mxu0
    %v432 = vadd.f32 %v383, %v431
    %v433 = vpop.f32.mrb[0].mxu0
    %v434 = vpop.f32.mrb[0].mxu0
    %v435 = vadd.f32 %v386, %v434
    %v436 = vpop.f32.mrb[0].mxu0
    %437 = vdwg.mxu0
    %v438 = vld [vmem:[%s2] sm:$0x1]
    %v439 = vld [vmem:[%s3] sm:$0x1]
    %v440 = vadd.f32 %v424, %v427
    %v441 = vadd.f32 %v440, %v432
    %v442 = vadd.f32 %v441, %v435
    %v443 = vrot.slane %v442, 4
    %v444 = vadd.f32 %v442, %v443
    %v445 = vrot.slane %v444, 2
    %v446 = vadd.f32 %v444, %v445
    %v447 = vrot.slane %v446, 1
    %v448 = vadd.f32 %v446, %v447
    %v449 = vmul.f32 %v424, %v424
    %v450 = vmul.f32 %v427, %v427
    %v451 = vmul.f32 %v432, %v432
    %v452 = vmul.f32 %v435, %v435
    %v453 = vadd.f32 %v449, %v450
    %v454 = vadd.f32 %v453, %v451
    %v455 = vadd.f32 %v454, %v452
    %v456 = vrot.slane %v455, 4
    %v457 = vadd.f32 %v455, %v456
    %v458 = vrot.slane %v457, 2
    %v459 = vadd.f32 %v457, %v458
    %v460 = vrot.slane %v459, 1
    %v461 = vadd.f32 %v459, %v460
    %vm462 = vcmask 1040384
    %v463 = vsel %vm462, %v448, %v461
    %464 = vmatprep.subr.mxu0 0.0
    %465 = vmatpush1.msra.mxu0 %v72
    %466 = vmatprep.subr.mxu0 0.0
    %467 = vmatpush1.msra.mxu0 %v73
    %468 = vmatprep.subr.mxu0 0.0
    %469 = vmatpush1.msra.mxu0 %v74
    %470 = vmatprep.subr.mxu0 0.0
    %471 = vmatpush1.msra.mxu0 %v75
    %472 = vmatprep.subr.mxu0 0.0
    %473 = vmatpush1.msra.mxu0 %v76
    %474 = vmatprep.subr.mxu0 0.0
    %475 = vmatpush1.msra.mxu0 %v77
    %476 = vmatprep.subr.mxu0 0.0
    %477 = vmatpush1.msra.mxu0 %v78
    %478 = vmatprep.subr.mxu0 0.0
    %479 = vmatpush1.msra.mxu0 %v79
    %480 = vmatprep.subr.mxu0 0.0
    %481 = vmatpush1.msra.mxu0 %v80
    %482 = vmatprep.subr.mxu0 0.0
    %483 = vmatpush1.msra.mxu0 %v81
    %484 = vmatprep.subr.mxu0 0.0
    %485 = vmatpush1.msra.mxu0 %v82
    %486 = vmatprep.subr.mxu0 0.0
    %487 = vmatpush1.msra.mxu0 %v83
    %488 = vmatprep.subr.mxu0 0.0
    %489 = vmatpush1.msra.mxu0 %v84
    %490 = vmatprep.subr.mxu0 0.0
    %491 = vmatpush1.msra.mxu0 %v85
    %492 = vmatprep.subr.mxu0 0.0
    %493 = vmatpush1.msra.mxu0 %v86
    %494 = vmatprep.subr.mxu0 0.0
    %495 = vmatpush1.msra.mxu0 %v87
    %496 = vmatprep.subr.mxu0 0.0
    %497 = vmatpush1.msra.mxu0 0.0
    %498 = vmatprep.subr.mxu0 0.0
    %499 = vmatpush1.msra.mxu0 0.0
    %500 = vmatprep.subr.mxu0 0.0
    %501 = vmatpush1.msra.mxu0 0.0
    %502 = vmatprep.subr.mxu0 0.0
    %503 = vmatpush1.msra.mxu0 0.0
    %504 = vmatprep.subr.mxu0 0.0
    %505 = vmatpush1.msra.mxu0 0.0
    %506 = vmatprep.subr.mxu0 0.0
    %507 = vmatpush1.msra.mxu0 0.0
    %508 = vmatprep.subr.mxu0 0.0
    %509 = vmatpush1.msra.mxu0 0.0
    %510 = vmatprep.subr.mxu0 0.0
    %511 = vmatpush1.msra.mxu0 0.0
    %512 = vmatprep.subr.mxu0 0.0
    %513 = vmatpush1.msra.mxu0 0.0
    %514 = vmatprep.subr.mxu0 0.0
    %515 = vmatpush1.msra.mxu0 0.0
    %516 = vmatprep.subr.mxu0 0.0
    %517 = vmatpush1.msra.mxu0 0.0
    %518 = vmatprep.subr.mxu0 0.0
    %519 = vmatpush1.msra.mxu0 0.0
    %520 = vmatprep.subr.mxu0 0.0
    %521 = vmatpush1.msra.mxu0 0.0
    %522 = vmatprep.subr.mxu0 0.0
    %523 = vmatpush1.msra.mxu0 0.0
    %524 = vmatprep.subr.mxu0 0.0
    %525 = vmatpush1.msra.mxu0 0.0
    %526 = vmatprep.subr.mxu0 0.0
    %527 = vmatpush1.msra.mxu0 0.0
    %528 = vmatprep.mubr.f32.mxu0 0.0
    %529 = vmatmul.mubr.f32.gmra.mrb[0].mxu0 %v463
    %v530 = vpop.f32.mrb[0].mxu0
    %v531 = vadd.f32 0.0, %v530
    %v532 = vpop.f32.mrb[0].mxu0
    %533 = vdwg.mxu0
    %v534 = vmul.f32 %v531, 0.001953125
    %v535 = vmul.f32 %v534, %v534
    %v537 = vrot.slane %v535, 7
    %v539 = vsub.f32 %v534, %v537
    %v540 = vadd.f32 %v539, 1e-05
    %v541 = vrsqrt.pop %v540
    %v543 = vlaneseq
    %v544 = vshrl.u32 %v543, 7
    %v545 = vsub.s32 0, %v544
    %v546 = vrot.slane %v438, %v545
    %v548 = vmul.f32 %v541, %v546
    %v550 = vrot.slane %v548, 1
    %v552 = vmul.f32 %v534, %v550
    %v553 = vsub.f32 %v439, %v552
    %v554 = vlaneseq
    %v555 = vshrl.u32 %v554, 7
    %v556 = vsub.s32 1, %v555
    %v557 = vrot.slane %v548, %v556
    %v558 = vmul.f32 %v424, %v557
    %v559 = vmul.f32 %v427, %v557
    %v560 = vmul.f32 %v432, %v557
    %v561 = vmul.f32 %v435, %v557
    %v563 = vlaneseq
    %v564 = vshrl.u32 %v563, 7
    %v565 = vsub.s32 0, %v564
    %v566 = vrot.slane %v553, %v565
    %v568 = vadd.f32 %v558, %v566
    %v569 = vadd.f32 %v559, %v566
    %v570 = vadd.f32 %v560, %v566
    %v571 = vadd.f32 %v561, %v566
    %v572 = vmax.f32 %v568, 0.0
    %v573 = vmax.f32 %v569, 0.0
    %v574 = vmax.f32 %v570, 0.0
    %v575 = vmax.f32 %v571, 0.0
    %v576 = vpack.c.bf16 %v573, %v572
    %v577 = vpack.c.bf16 %v575, %v574
    %v579 = vshrl.u32 %v576, 16
    %v581 = vrot.slane %v579, 7
    %v582 = vshll.u32 %v576, 16
    %v584 = vor.u32 %v581, %v582
    %v586 = vshrl.u32 %v577, 16
    %v588 = vrot.slane %v586, 7
    %v589 = vshll.u32 %v577, 16
    %v591 = vor.u32 %v588, %v589
    %vm596 = vcmask 1040384
    %vm597 = vsmask.f32 256
    %vm598 = vmand %vm596, %vm597
    %v599 = vsel %vm598, 0, %v584
    %v600 = vsel %vm598, 0, %v591
    %v601 = vsel %vm598, %v581, 0
    %v602 = vsel %vm598, %v588, 0
    %v604 = vshrl.u32 %v599, 16
    %v606 = vshll.u32 %v599, 16
    %v608 = vrot.slane %v606, 1
    %v609 = vor.u32 %v604, %v608
    %v611 = vshll.u32 %v601, 16
    %v613 = vrot.slane %v611, 1
    %v614 = vsel %vm112, %v609, %v613
    %v616 = vshrl.u32 %v600, 16
    %v618 = vshll.u32 %v600, 16
    %v620 = vrot.slane %v618, 1
    %v621 = vor.u32 %v616, %v620
    %v623 = vshll.u32 %v602, 16
    %v625 = vrot.slane %v623, 1
    %v626 = vsel %vm112, %v621, %v625
    %v633 = vrot.slane %v599, 1
    %v634 = vrot.slane %v601, 1
    %v635 = vsel %vm139, %v633, %v634
    %v636 = vrot.slane %v600, 1
    %v637 = vrot.slane %v602, 1
    %v638 = vsel %vm139, %v636, %v637
    %v641 = vld [vmem:[#allocation5] sm:$0xf]
    %v642 = vld [vmem:[#allocation5 + $0x4] sm:$0xf]
    %v643 = vld [vmem:[#allocation5 + $0x8] sm:$0xf]
    %v644 = vld [vmem:[#allocation5 + $0xc] sm:$0xf]
    %v645 = vld [vmem:[#allocation5 + $0x10] sm:$0xf]
    %v646 = vld [vmem:[#allocation5 + $0x14] sm:$0xf]
    %v647 = vld [vmem:[#allocation5 + $0x18] sm:$0xf]
    %v648 = vld [vmem:[#allocation5 + $0x1c] sm:$0xf]
    %v649 = vld [vmem:[#allocation5 + $0x20] sm:$0xf]
    %v650 = vld [vmem:[#allocation5 + $0x24] sm:$0xf]
    %v651 = vld [vmem:[#allocation5 + $0x28] sm:$0xf]
    %v652 = vld [vmem:[#allocation5 + $0x2c] sm:$0xf]
    %v653 = vld [vmem:[#allocation5 + $0x30] sm:$0xf]
    %v654 = vld [vmem:[#allocation5 + $0x34] sm:$0xf]
    %v655 = vld [vmem:[#allocation5 + $0x38] sm:$0xf]
    %v656 = vld [vmem:[#allocation5 + $0x3c] sm:$0xf]
    %v657 = vld [vmem:[#allocation5 + $0x40] sm:$0xf]
    %v658 = vld [vmem:[#allocation5 + $0x44] sm:$0xf]
    %v659 = vld [vmem:[#allocation5 + $0x48] sm:$0xf]
    %v660 = vld [vmem:[#allocation5 + $0x4c] sm:$0xf]
    %v661 = vld [vmem:[#allocation5 + $0x50] sm:$0xf]
    %v662 = vld [vmem:[#allocation5 + $0x54] sm:$0xf]
    %v663 = vld [vmem:[#allocation5 + $0x58] sm:$0xf]
    %v664 = vld [vmem:[#allocation5 + $0x5c] sm:$0xf]
    %v665 = vld [vmem:[#allocation5 + $0x60] sm:$0xf]
    %v666 = vld [vmem:[#allocation5 + $0x64] sm:$0xf]
    %v667 = vld [vmem:[#allocation5 + $0x68] sm:$0xf]
    %v668 = vld [vmem:[#allocation5 + $0x6c] sm:$0xf]
    %v669 = vld [vmem:[#allocation5 + $0x70] sm:$0xf]
    %v670 = vld [vmem:[#allocation5 + $0x74] sm:$0xf]
    %v671 = vld [vmem:[#allocation5 + $0x78] sm:$0xf]
    %v672 = vld [vmem:[#allocation5 + $0x7c] sm:$0xf]
    %v673 = vld [vmem:[#allocation5 + $0x80] sm:$0xf]
    %v674 = vld [vmem:[#allocation5 + $0x84] sm:$0xf]
    %v675 = vld [vmem:[#allocation5 + $0x88] sm:$0xf]
    %v676 = vld [vmem:[#allocation5 + $0x8c] sm:$0xf]
    %v677 = vld [vmem:[#allocation5 + $0x90] sm:$0xf]
    %v678 = vld [vmem:[#allocation5 + $0x94] sm:$0xf]
    %v679 = vld [vmem:[#allocation5 + $0x98] sm:$0xf]
    %v680 = vld [vmem:[#allocation5 + $0x9c] sm:$0xf]
    %v681 = vld [vmem:[#allocation5 + $0xa0] sm:$0xf]
    %v682 = vld [vmem:[#allocation5 + $0xa4] sm:$0xf]
    %v683 = vld [vmem:[#allocation5 + $0xa8] sm:$0xf]
    %v684 = vld [vmem:[#allocation5 + $0xac] sm:$0xf]
    %v685 = vld [vmem:[#allocation5 + $0xb0] sm:$0xf]
    %v686 = vld [vmem:[#allocation5 + $0xb4] sm:$0xf]
    %v687 = vld [vmem:[#allocation5 + $0xb8] sm:$0xf]
    %v688 = vld [vmem:[#allocation5 + $0xbc] sm:$0xf]
    %v737 = vunpack.c.l.b16 %v641
    %v738 = vunpack.c.l.b16 %v642
    %v739 = vunpack.c.l.b16 %v643
    %v740 = vunpack.c.l.b16 %v644
    %v741 = vunpack.c.l.b16 %v645
    %v742 = vunpack.c.l.b16 %v646
    %v743 = vunpack.c.l.b16 %v647
    %v744 = vunpack.c.l.b16 %v648
    %v745 = vunpack.c.l.b16 %v649
    %v746 = vunpack.c.l.b16 %v650
    %v747 = vunpack.c.l.b16 %v651
    %v748 = vunpack.c.l.b16 %v652
    %v749 = vunpack.c.l.b16 %v653
    %v750 = vunpack.c.l.b16 %v654
    %v751 = vunpack.c.l.b16 %v655
    %v752 = vunpack.c.l.b16 %v656
    %v753 = vunpack.c.l.b16 %v657
    %v754 = vunpack.c.l.b16 %v658
    %v755 = vunpack.c.l.b16 %v659
    %v756 = vunpack.c.l.b16 %v660
    %v757 = vunpack.c.l.b16 %v661
    %v758 = vunpack.c.l.b16 %v662
    %v759 = vunpack.c.l.b16 %v663
    %v760 = vunpack.c.l.b16 %v664
    %v761 = vunpack.c.l.b16 %v665
    %v762 = vunpack.c.l.b16 %v666
    %v763 = vunpack.c.l.b16 %v667
    %v764 = vunpack.c.l.b16 %v668
    %v765 = vunpack.c.l.b16 %v669
    %v766 = vunpack.c.l.b16 %v670
    %v767 = vunpack.c.l.b16 %v671
    %v768 = vunpack.c.l.b16 %v672
    %v769 = vunpack.c.l.b16 %v673
    %v770 = vunpack.c.l.b16 %v674
    %v771 = vunpack.c.l.b16 %v675
    %v772 = vunpack.c.l.b16 %v676
    %v773 = vunpack.c.l.b16 %v677
    %v774 = vunpack.c.l.b16 %v678
    %v775 = vunpack.c.l.b16 %v679
    %v776 = vunpack.c.l.b16 %v680
    %v777 = vunpack.c.l.b16 %v681
    %v778 = vunpack.c.l.b16 %v682
    %v779 = vunpack.c.l.b16 %v683
    %v780 = vunpack.c.l.b16 %v684
    %v781 = vunpack.c.l.b16 %v685
    %v782 = vunpack.c.l.b16 %v686
    %v783 = vunpack.c.l.b16 %v687
    %v784 = vunpack.c.l.b16 %v688
    %v785 = vpack.c.b16 %v738, %v737
    %v786 = vpack.c.b16 %v740, %v739
    %v787 = vpack.c.b16 %v742, %v741
    %v788 = vpack.c.b16 %v744, %v743
    %v789 = vpack.c.b16 %v746, %v745
    %v790 = vpack.c.b16 %v748, %v747
    %v791 = vpack.c.b16 %v750, %v749
    %v792 = vpack.c.b16 %v752, %v751
    %v793 = vpack.c.b16 %v754, %v753
    %v794 = vpack.c.b16 %v756, %v755
    %v795 = vpack.c.b16 %v758, %v757
    %v796 = vpack.c.b16 %v760, %v759
    %v797 = vpack.c.b16 %v762, %v761
    %v798 = vpack.c.b16 %v764, %v763
    %v799 = vpack.c.b16 %v766, %v765
    %v800 = vpack.c.b16 %v768, %v767
    %v801 = vpack.c.b16 %v770, %v769
    %v802 = vpack.c.b16 %v772, %v771
    %v803 = vpack.c.b16 %v774, %v773
    %v804 = vpack.c.b16 %v776, %v775
    %v805 = vpack.c.b16 %v778, %v777
    %v806 = vpack.c.b16 %v780, %v779
    %v807 = vpack.c.b16 %v782, %v781
    %v808 = vpack.c.b16 %v784, %v783
    %833 = vmatprep.subr.bf16.mxu0 0
    %834 = vmatpush1.bf16.msra.mxu0 %v785
    %835 = vmatprep.subr.bf16.mxu0 0
    %836 = vmatpush1.bf16.msra.mxu0 %v786
    %837 = vmatprep.subr.bf16.mxu0 0
    %838 = vmatpush1.bf16.msra.mxu0 %v787
    %839 = vmatprep.subr.bf16.mxu0 0
    %840 = vmatpush1.bf16.msra.mxu0 %v788
    %841 = vmatprep.subr.bf16.mxu0 0
    %842 = vmatpush1.bf16.msra.mxu0 %v789
    %843 = vmatprep.subr.bf16.mxu0 0
    %844 = vmatpush1.bf16.msra.mxu0 %v790
    %845 = vmatprep.subr.bf16.mxu0 0
    %846 = vmatpush1.bf16.msra.mxu0 %v791
    %847 = vmatprep.subr.bf16.mxu0 0
    %848 = vmatpush1.bf16.msra.mxu0 %v792
    %849 = vmatprep.subr.bf16.mxu0 0
    %850 = vmatpush1.bf16.msra.mxu0 %v793
    %851 = vmatprep.subr.bf16.mxu0 0
    %852 = vmatpush1.bf16.msra.mxu0 %v794
    %853 = vmatprep.subr.bf16.mxu0 0
    %854 = vmatpush1.bf16.msra.mxu0 %v795
    %855 = vmatprep.subr.bf16.mxu0 0
    %856 = vmatpush1.bf16.msra.mxu0 %v796
    %857 = vmatprep.subr.bf16.mxu0 0
    %858 = vmatpush1.bf16.msra.mxu0 %v797
    %859 = vmatprep.subr.bf16.mxu0 0
    %860 = vmatpush1.bf16.msra.mxu0 %v798
    %861 = vmatprep.subr.bf16.mxu0 0
    %862 = vmatpush1.bf16.msra.mxu0 %v799
    %863 = vmatprep.subr.bf16.mxu0 0
    %864 = vmatpush1.bf16.msra.mxu0 %v800
    %865 = vmatprep.mubr.bf16.mxu0 %v614
    %866 = vmatmul.mubr.bf16.gmra.mrb[0].mxu0 %v599
    %v867 = vpop.f32.mrb[0].mxu0
    %v868 = vadd.f32 0.0, %v867
    %v869 = vpop.f32.mrb[0].mxu0
    %v870 = vpop.f32.mrb[0].mxu0
    %v871 = vadd.f32 0.0, %v870
    %v872 = vpop.f32.mrb[0].mxu0
    %873 = vmatprep.mubr.bf16.mxu0 %v626
    %874 = vmatmul.mubr.bf16.gmra.mrb[0].mxu0 %v600
    %v875 = vpop.f32.mrb[0].mxu0
    %v876 = vadd.f32 0.0, %v875
    %v877 = vpop.f32.mrb[0].mxu0
    %v878 = vpop.f32.mrb[0].mxu0
    %v879 = vadd.f32 0.0, %v878
    %v880 = vpop.f32.mrb[0].mxu0
    %881 = vdwg.mxu0
    %882 = vmatprep.subr.bf16.mxu0 0
    %883 = vmatpush1.bf16.msra.mxu0 %v801
    %884 = vmatprep.subr.bf16.mxu0 0
    %885 = vmatpush1.bf16.msra.mxu0 %v802
    %886 = vmatprep.subr.bf16.mxu0 0
    %887 = vmatpush1.bf16.msra.mxu0 %v803
    %888 = vmatprep.subr.bf16.mxu0 0
    %889 = vmatpush1.bf16.msra.mxu0 %v804
    %890 = vmatprep.subr.bf16.mxu0 0
    %891 = vmatpush1.bf16.msra.mxu0 %v805
    %892 = vmatprep.subr.bf16.mxu0 0
    %893 = vmatpush1.bf16.msra.mxu0 %v806
    %894 = vmatprep.subr.bf16.mxu0 0
    %895 = vmatpush1.bf16.msra.mxu0 %v807
    %896 = vmatprep.subr.bf16.mxu0 0
    %897 = vmatpush1.bf16.msra.mxu0 %v808
    %898 = vmatprep.subr.bf16.mxu0 0
    %899 = vmatpush1.bf16.msra.mxu0 0
    %900 = vmatprep.subr.bf16.mxu0 0
    %901 = vmatpush1.bf16.msra.mxu0 0
    %902 = vmatprep.subr.bf16.mxu0 0
    %903 = vmatpush1.bf16.msra.mxu0 0
    %904 = vmatprep.subr.bf16.mxu0 0
    %905 = vmatpush1.bf16.msra.mxu0 0
    %906 = vmatprep.subr.bf16.mxu0 0
    %907 = vmatpush1.bf16.msra.mxu0 0
    %908 = vmatprep.subr.bf16.mxu0 0
    %909 = vmatpush1.bf16.msra.mxu0 0
    %910 = vmatprep.subr.bf16.mxu0 0
    %911 = vmatpush1.bf16.msra.mxu0 0
    %912 = vmatprep.subr.bf16.mxu0 0
    %913 = vmatpush1.bf16.msra.mxu0 0
    %914 = vmatprep.mubr.bf16.mxu0 0
    %915 = vmatmul.mubr.bf16.gmra.mrb[0].mxu0 %v635
    %v916 = vpop.f32.mrb[0].mxu0
    %v917 = vadd.f32 %v868, %v916
    %v918 = vpop.f32.mrb[0].mxu0
    %v919 = vpop.f32.mrb[0].mxu0
    %v920 = vadd.f32 %v871, %v919
    %v921 = vpop.f32.mrb[0].mxu0
    %922 = vmatprep.mubr.bf16.mxu0 0
    %923 = vmatmul.mubr.bf16.gmra.mrb[0].mxu0 %v638
    %v924 = vpop.f32.mrb[0].mxu0
    %v925 = vadd.f32 %v876, %v924
    %v926 = vpop.f32.mrb[0].mxu0
    %v927 = vpop.f32.mrb[0].mxu0
    %v928 = vadd.f32 %v879, %v927
    %v929 = vpop.f32.mrb[0].mxu0
    %930 = vdwg.mxu0
    %v931 = vld [vmem:[%s5] sm:$0x1]
    %v932 = vld [vmem:[%s6] sm:$0x1]
    %v933 = vadd.f32 %v917, %v920
    %v934 = vadd.f32 %v933, %v925
    %v935 = vadd.f32 %v934, %v928
    %v936 = vrot.slane %v935, 4
    %v937 = vadd.f32 %v935, %v936
    %v938 = vrot.slane %v937, 2
    %v939 = vadd.f32 %v937, %v938
    %v940 = vrot.slane %v939, 1
    %v941 = vadd.f32 %v939, %v940
    %v942 = vmul.f32 %v917, %v917
    %v943 = vmul.f32 %v920, %v920
    %v944 = vmul.f32 %v925, %v925
    %v945 = vmul.f32 %v928, %v928
    %v946 = vadd.f32 %v942, %v943
    %v947 = vadd.f32 %v946, %v944
    %v948 = vadd.f32 %v947, %v945
    %v949 = vrot.slane %v948, 4
    %v950 = vadd.f32 %v948, %v949
    %v951 = vrot.slane %v950, 2
    %v952 = vadd.f32 %v950, %v951
    %v953 = vrot.slane %v952, 1
    %v954 = vadd.f32 %v952, %v953
    %v955 = vsel %vm462, %v941, %v954
    %956 = vmatprep.subr.mxu0 0.0
    %957 = vmatpush1.msra.mxu0 %v72
    %958 = vmatprep.subr.mxu0 0.0
    %959 = vmatpush1.msra.mxu0 %v73
    %960 = vmatprep.subr.mxu0 0.0
    %961 = vmatpush1.msra.mxu0 %v74
    %962 = vmatprep.subr.mxu0 0.0
    %963 = vmatpush1.msra.mxu0 %v75
    %964 = vmatprep.subr.mxu0 0.0
    %965 = vmatpush1.msra.mxu0 %v76
    %966 = vmatprep.subr.mxu0 0.0
    %967 = vmatpush1.msra.mxu0 %v77
    %968 = vmatprep.subr.mxu0 0.0
    %969 = vmatpush1.msra.mxu0 %v78
    %970 = vmatprep.subr.mxu0 0.0
    %971 = vmatpush1.msra.mxu0 %v79
    %972 = vmatprep.subr.mxu0 0.0
    %973 = vmatpush1.msra.mxu0 %v80
    %974 = vmatprep.subr.mxu0 0.0
    %975 = vmatpush1.msra.mxu0 %v81
    %976 = vmatprep.subr.mxu0 0.0
    %977 = vmatpush1.msra.mxu0 %v82
    %978 = vmatprep.subr.mxu0 0.0
    %979 = vmatpush1.msra.mxu0 %v83
    %980 = vmatprep.subr.mxu0 0.0
    %981 = vmatpush1.msra.mxu0 %v84
    %982 = vmatprep.subr.mxu0 0.0
    %983 = vmatpush1.msra.mxu0 %v85
    %984 = vmatprep.subr.mxu0 0.0
    %985 = vmatpush1.msra.mxu0 %v86
    %986 = vmatprep.subr.mxu0 0.0
    %987 = vmatpush1.msra.mxu0 %v87
    %988 = vmatprep.subr.mxu0 0.0
    %989 = vmatpush1.msra.mxu0 0.0
    %990 = vmatprep.subr.mxu0 0.0
    %991 = vmatpush1.msra.mxu0 0.0
    %992 = vmatprep.subr.mxu0 0.0
    %993 = vmatpush1.msra.mxu0 0.0
    %994 = vmatprep.subr.mxu0 0.0
    %995 = vmatpush1.msra.mxu0 0.0
    %996 = vmatprep.subr.mxu0 0.0
    %997 = vmatpush1.msra.mxu0 0.0
    %998 = vmatprep.subr.mxu0 0.0
    %999 = vmatpush1.msra.mxu0 0.0
    %1000 = vmatprep.subr.mxu0 0.0
    %1001 = vmatpush1.msra.mxu0 0.0
    %1002 = vmatprep.subr.mxu0 0.0
    %1003 = vmatpush1.msra.mxu0 0.0
    %1004 = vmatprep.subr.mxu0 0.0
    %1005 = vmatpush1.msra.mxu0 0.0
    %1006 = vmatprep.subr.mxu0 0.0
    %1007 = vmatpush1.msra.mxu0 0.0
    %1008 = vmatprep.subr.mxu0 0.0
    %1009 = vmatpush1.msra.mxu0 0.0
    %1010 = vmatprep.subr.mxu0 0.0
    %1011 = vmatpush1.msra.mxu0 0.0
    %1012 = vmatprep.subr.mxu0 0.0
    %1013 = vmatpush1.msra.mxu0 0.0
    %1014 = vmatprep.subr.mxu0 0.0
    %1015 = vmatpush1.msra.mxu0 0.0
    %1016 = vmatprep.subr.mxu0 0.0
    %1017 = vmatpush1.msra.mxu0 0.0
    %1018 = vmatprep.subr.mxu0 0.0
    %1019 = vmatpush1.msra.mxu0 0.0
    %1020 = vmatprep.mubr.f32.mxu0 0.0
    %1021 = vmatmul.mubr.f32.gmra.mrb[0].mxu0 %v955
    %v1022 = vpop.f32.mrb[0].mxu0
    %v1023 = vadd.f32 0.0, %v1022
    %v1024 = vpop.f32.mrb[0].mxu0
    %1025 = vdwg.mxu0
    %v1026 = vmul.f32 %v1023, 0.001953125
    %v1027 = vmul.f32 %v1026, %v1026
    %v1029 = vrot.slane %v1027, 7
    %v1031 = vsub.f32 %v1026, %v1029
    %v1032 = vadd.f32 %v1031, 1e-05
    %v1033 = vrsqrt.pop %v1032
    %v1035 = vlaneseq
    %v1036 = vshrl.u32 %v1035, 7
    %v1037 = vsub.s32 0, %v1036
    %v1038 = vrot.slane %v931, %v1037
    %v1040 = vmul.f32 %v1033, %v1038
    %v1042 = vrot.slane %v1040, 1
    %v1044 = vmul.f32 %v1026, %v1042
    %v1045 = vsub.f32 %v932, %v1044
    %v1046 = vlaneseq
    %v1047 = vshrl.u32 %v1046, 7
    %v1048 = vsub.s32 1, %v1047
    %v1049 = vrot.slane %v1040, %v1048
    %v1050 = vmul.f32 %v917, %v1049
    %v1051 = vmul.f32 %v920, %v1049
    %v1052 = vmul.f32 %v925, %v1049
    %v1053 = vmul.f32 %v928, %v1049
    %v1055 = vlaneseq
    %v1056 = vshrl.u32 %v1055, 7
    %v1057 = vsub.s32 0, %v1056
    %v1058 = vrot.slane %v1045, %v1057
    %v1060 = vadd.f32 %v1050, %v1058
    %v1061 = vadd.f32 %v1051, %v1058
    %v1062 = vadd.f32 %v1052, %v1058
    %v1063 = vadd.f32 %v1053, %v1058
    %v1064 = vmax.f32 %v1060, 0.0
    %v1065 = vmax.f32 %v1061, 0.0
    %v1066 = vmax.f32 %v1062, 0.0
    %v1067 = vmax.f32 %v1063, 0.0
    %1068 = vst [vmem:[#allocation8] sm:$0xff] %v1064
    %1069 = vst [vmem:[#allocation8 + $0x8] sm:$0xff] %v1065
    %1070 = vst [vmem:[#allocation8 + $0x10] sm:$0xff] %v1066
    %1071 = vst [vmem:[#allocation8 + $0x18] sm:$0xff] %v1067
    // Predicated region
    $region46: #{tpu_custom_call.1} parent=1 // pred_check
      _
    $region47: #{tpu_custom_call.1} parent=1 // pred_check_branch
      %1073 = sbr.rel (0) target = $region49
    $region48: #{tpu_custom_call.1} parent=1 // pred_region
      %s1075 = ssub.s32 512, 512
      %1076 = vsyncadd [#allocation4], %s1075
      %s1077 = sshll.u32 [#allocation8], 4
      %s1078 = int_to_ptr.vmem [resolvable:$true] %s1077
      %1083 = dma.vmem_to_hbm [thread:$0]  %s1078, 512, %s8, [#allocation4], 128, 128, 8
    $region49: #{tpu_custom_call.1} parent=1 // pred_fallthru
      _
    // Predicated region
    $region50: #{tpu_custom_call.1} parent=1 // pred_check
      _
    $region51: #{tpu_custom_call.1} parent=1 // pred_check_branch
      %1085 = sbr.rel (0) target = $region53
    $region52: #{tpu_custom_call.1} parent=1 // pred_region
      %1086 = dma.done [#allocation4], 512
    $region53: #{tpu_custom_call.1} parent=1 // pred_fallthru
      _
    %1087 = vsyncpa [#allocation3], 1
    %1088 = vsyncpa [#allocation6], 1
    %1089 = vsyncpa [#allocation4], 1

</llo_original>
